<compile_context>
chip_gen: v7x
topology: tpu7x:2x2x1
jax: 0.10.0
libtpu: 0.0.40
codegen_flags: <defaults>
</compile_context>

<pallas_src>
import math

import jax
import jax.numpy as jnp
from jax import lax
from jax.experimental import pallas as pl
from jax.experimental.pallas import tpu as pltpu


def _generator_kernel(x_ref, w_ref, b_ref, out_ref, m_ref, l_ref):
    # x_ref   : (tb, d_model)  bf16   activation tile (resident across j)
    # w_ref   : (tv, d_model)  bf16   weight tile, native nn.Linear layout
    # b_ref   : (1, vocab)     f32    full bias, resident across i and j
    # out_ref : (tb, vocab)    f32    full logits row, resident across j
    # m_ref, l_ref : (tb, 1)   f32    online max / sum-exp scratch
    j = pl.program_id(1)
    tv = w_ref.shape[0]

    @pl.when(j == 0)
    def _():
        m_ref[...] = jnp.full_like(m_ref, -jnp.inf)
        l_ref[...] = jnp.zeros_like(l_ref)

    col = pl.multiple_of(j * tv, 128)

    # (tb, d_model) x (tv, d_model) -> (tb, tv), contracting d_model on both
    # operands (no transposed weight copy needed).  bf16 MXU, f32 accumulation.
    logits = lax.dot_general(
        x_ref[...], w_ref[...],
        dimension_numbers=(((1,), (1,)), ((), ())),
        preferred_element_type=jnp.float32,
    ) + b_ref[:, pl.ds(col, tv)]
    out_ref[:, pl.ds(col, tv)] = logits

    # Online logsumexp across vocab tiles.
    m_prev = m_ref[...]
    m_new = jnp.maximum(m_prev, logits.max(axis=-1, keepdims=True))
    l_ref[...] = (l_ref[...] * jnp.exp(m_prev - m_new)
                  + jnp.exp(logits - m_new).sum(axis=-1, keepdims=True))
    m_ref[...] = m_new

    # Normalize the resident row in VMEM just before its single HBM writeback.
    @pl.when(j == pl.num_programs(1) - 1)
    def _():
        lse = m_ref[...] + jnp.log(l_ref[...])
        out_ref[...] = out_ref[...] - lse


def _largest_tile(total, preferred, align):
    """Largest multiple of `align` that divides `total` and is <= `preferred`;
    falls back to `total` (full extent) if no such multiple exists."""
    best = None
    cap = min(preferred, total)
    t = align
    while t <= cap:
        if total % t == 0:
            best = t
        t += align
    return best if best is not None else total


def _vmem_capacity_bytes():
    try:
        return int(pltpu.get_tpu_info().vmem_capacity_bytes)
    except Exception:
        return 64 * 1024 * 1024  # conservative default (v7x per-TensorCore VMEM)


def generator_forward(x, weight, bias, *, token_block=256, vocab_block=512):
    """Pallas equivalent of Generator.forward: log_softmax(x @ W.T + b, -1)."""
    orig_shape = x.shape
    d_model = orig_shape[-1]
    vocab, d_model_w = weight.shape
    assert d_model_w == d_model
    n_tokens = math.prod(orig_shape[:-1])

    # bf16 operands for the MXU; bias and all accumulation stay f32.
    xt = x.reshape(n_tokens, d_model).astype(jnp.bfloat16)
    wb = weight.astype(jnp.bfloat16)          # native (vocab, d_model) layout, no transpose
    b2 = bias.reshape(1, vocab).astype(jnp.float32)

    tv = _largest_tile(vocab, vocab_block, 128)
    tb = _largest_tile(n_tokens, token_block, 8)

    vmem_cap = _vmem_capacity_bytes()
    budget = int(0.7 * vmem_cap)

    def vmem_needed(tb_, tv_):
        return (2 * tb_ * vocab * 4          # resident logits row (double-buffered over i)
                + 2 * tb_ * d_model * 2      # x tile, bf16, double-buffered
                + 2 * tv_ * d_model * 2      # weight tile, bf16, double-buffered
                + 2 * vocab * 4              # resident bias
                + 2 * tb_ * 4 * 2)           # m/l scratch

    # Shrink the token block until the resident (tb, vocab) row fits VMEM.
    while tb > 8 and vmem_needed(tb, tv) > budget:
        nxt = _largest_tile(n_tokens, tb // 2, 8)
        if nxt == tb:
            break
        tb = nxt
    # TODO(synk): for extremely large vocab where even tb=8 does not fit VMEM,
    # fall back to a two-pass (unnormalized logits + normalize) variant.

    grid = (n_tokens // tb, vocab // tv)
    vmem_limit = int(min(max(2 * vmem_needed(tb, tv), 8 * 1024 * 1024), budget))

    out = pl.pallas_call(
        _generator_kernel,
        out_shape=jax.ShapeDtypeStruct((n_tokens, vocab), jnp.float32),
        grid_spec=pltpu.PrefetchScalarGridSpec(
            num_scalar_prefetch=0,
            grid=grid,
            in_specs=[
                pl.BlockSpec((tb, d_model), lambda i, j: (i, 0)),   # activations
                pl.BlockSpec((tv, d_model), lambda i, j: (j, 0)),   # weight (native layout)
                pl.BlockSpec((1, vocab), lambda i, j: (0, 0)),      # bias (resident)
            ],
            out_specs=pl.BlockSpec((tb, vocab), lambda i, j: (i, 0)),  # resident logits row
            scratch_shapes=[pltpu.VMEM((tb, 1), jnp.float32),       # running max
                            pltpu.VMEM((tb, 1), jnp.float32)],      # running sum-exp
        ),
        compiler_params=pltpu.CompilerParams(
            dimension_semantics=("parallel", "arbitrary"),
            vmem_limit_bytes=vmem_limit,
        ),
    )(xt, wb, b2)

    return out.reshape(*orig_shape[:-1], vocab)


if __name__ == "__main__":
    batch, seq, d_model, vocab = 2, 8, 128, 512

    key = jax.random.PRNGKey(0)
    k_x, k_w, k_b = jax.random.split(key, 3)

    # nn.Linear default init: U(-1/sqrt(d_model), 1/sqrt(d_model)).
    bound = 1.0 / math.sqrt(d_model)
    # Round inputs to bf16-representable values so the check is robust to the
    # kernel's bf16-operand / f32-accumulate MXU matmul.
    weight = jax.random.uniform(k_w, (vocab, d_model), jnp.float32,
                                -bound, bound).astype(jnp.bfloat16).astype(jnp.float32)
    bias = jax.random.uniform(k_b, (vocab,), jnp.float32,
                              -bound, bound).astype(jnp.bfloat16).astype(jnp.float32)
    x = jax.random.normal(k_x, (batch, seq, d_model),
                          jnp.float32).astype(jnp.bfloat16).astype(jnp.float32)

    out = generator_forward(x, weight, bias)
    out = jax.block_until_ready(out)

    # Reference: log_softmax(x @ W.T + b) in plain JAX at highest precision.
    logits_ref = jnp.einsum("bsd,vd->bsv", x, weight,
                            precision=lax.Precision.HIGHEST) + bias
    ref = jax.nn.log_softmax(logits_ref, axis=-1)

    assert out.shape == (batch, seq, vocab)
    assert jnp.allclose(out, ref, atol=1e-3, rtol=1e-3), float(
        jnp.max(jnp.abs(out - ref)))

    print("KERNEL_OK")
</pallas_src>

<mosaic_0001>
module attributes {stable_mosaic.version = 11 : i64} {
  func.func @_generator_kernel(%arg0: i32, %arg1: i32, %arg2: memref<16x128xbf16, #tpu.memory_space<vmem>>, %arg3: memref<512x128xbf16, #tpu.memory_space<vmem>>, %arg4: memref<1x512xf32, #tpu.memory_space<vmem>>, %arg5: memref<16x512xf32, #tpu.memory_space<vmem>>, %arg6: memref<16x1xf32, #tpu.memory_space<vmem>>, %arg7: memref<16x1xf32, #tpu.memory_space<vmem>>) attributes {dimension_semantics = [#tpu.dimension_semantics<parallel>, #tpu.dimension_semantics<arbitrary>], iteration_bounds = array<i64: 1, 1>, scalar_prefetch = 0 : i64, scratch_operands = 2 : i64, tpu.core_type = #tpu.core_type<tc>, window_params = [{transform_indices = @transform_0, window_bounds = array<i64: 16, 128>}, {transform_indices = @transform_1, window_bounds = array<i64: 512, 128>}, {pipeline_mode = #tpu.pipeline_mode<synchronous>, transform_indices = @transform_2, window_bounds = array<i64: 1, 512>}, {transform_indices = @transform_3, window_bounds = array<i64: 16, 512>}]} {
    %c0_i32 = arith.constant 0 : i32
    %0 = arith.cmpi eq, %arg1, %c0_i32 : i32
    %1 = arith.extui %0 : i1 to i32
    %c0_i32_0 = arith.constant 0 : i32
    %2 = arith.cmpi ne, %1, %c0_i32_0 : i32
    scf.if %2 {
      %cst_18 = arith.constant 0xFF800000 : f32
      %33 = vector.broadcast %cst_18 : f32 to vector<16x1xf32>
      %c0_19 = arith.constant 0 : index
      %c0_20 = arith.constant 0 : index
      %34 = vector.load %arg6[%c0_19, %c0_20] : memref<16x1xf32, #tpu.memory_space<vmem>>, vector<16x1xf32>
      tpu.vector_store %arg6[%c0_19, %c0_20], %33 {strides = array<i32>} : memref<16x1xf32, #tpu.memory_space<vmem>>, vector<16x1xf32>,
      %cst_21 = arith.constant 0.000000e+00 : f32
      %35 = vector.broadcast %cst_21 : f32 to vector<16x1xf32>
      %c0_22 = arith.constant 0 : index
      %c0_23 = arith.constant 0 : index
      %36 = vector.load %arg7[%c0_22, %c0_23] : memref<16x1xf32, #tpu.memory_space<vmem>>, vector<16x1xf32>
      tpu.vector_store %arg7[%c0_22, %c0_23], %35 {strides = array<i32>} : memref<16x1xf32, #tpu.memory_space<vmem>>, vector<16x1xf32>,
    } else {
    }
    %c512_i32 = arith.constant 512 : i32
    %3 = arith.muli %arg1, %c512_i32 : i32
    %4 = tpu.assume_multiple %3, 128 : i32
    %c0 = arith.constant 0 : index
    %c0_1 = arith.constant 0 : index
    %5 = vector.load %arg2[%c0, %c0_1] : memref<16x128xbf16, #tpu.memory_space<vmem>>, vector<16x128xbf16>
    %c0_2 = arith.constant 0 : index
    %c0_3 = arith.constant 0 : index
    %6 = vector.load %arg3[%c0_2, %c0_3] : memref<512x128xbf16, #tpu.memory_space<vmem>>, vector<512x128xbf16>
    %cst = arith.constant dense<0.000000e+00> : vector<16x512xf32>
    %7 = tpu.matmul %5, %6, %cst {dimension_numbers = #tpu.dot_dimension_numbers<[1], [1], [0], [0], [0, 0, 1, 0], [], []>} : vector<16x128xbf16>, vector<512x128xbf16>, vector<16x512xf32> -> vector<16x512xf32>
    %c0_4 = arith.constant 0 : index
    %8 = arith.index_cast %4 : i32 to index
    %9 = vector.load %arg4[%c0_4, %8] : memref<1x512xf32, #tpu.memory_space<vmem>>, vector<1x512xf32>
    %10 = vector.broadcast %9 : vector<1x512xf32> to vector<16x512xf32>
    %11 = arith.addf %7, %10 : vector<16x512xf32>
    %c0_5 = arith.constant 0 : index
    %12 = arith.index_cast %4 : i32 to index
    %13 = vector.load %arg5[%c0_5, %12] : memref<16x512xf32, #tpu.memory_space<vmem>>, vector<16x512xf32>
    tpu.vector_store %arg5[%c0_5, %12], %11 {strides = array<i32>} : memref<16x512xf32, #tpu.memory_space<vmem>>, vector<16x512xf32>,
    %c0_6 = arith.constant 0 : index
    %c0_7 = arith.constant 0 : index
    %14 = vector.load %arg6[%c0_6, %c0_7] : memref<16x1xf32, #tpu.memory_space<vmem>>, vector<16x1xf32>
    %cst_8 = arith.constant dense<0xFF800000> : vector<16xf32>
    %15 = vector.multi_reduction <maximumf>, %11, %cst_8 [1] : vector<16x512xf32> to vector<16xf32>
    %16 = vector.shape_cast %15 : vector<16xf32> to vector<16x1xf32>
    %17 = arith.maximumf %14, %16 : vector<16x1xf32>
    %c0_9 = arith.constant 0 : index
    %c0_10 = arith.constant 0 : index
    %18 = vector.load %arg7[%c0_9, %c0_10] : memref<16x1xf32, #tpu.memory_space<vmem>>, vector<16x1xf32>
    %19 = arith.subf %14, %17 : vector<16x1xf32>
    %20 = math.exp %19 : vector<16x1xf32>
    %21 = arith.mulf %18, %20 : vector<16x1xf32>
    %22 = vector.broadcast %17 : vector<16x1xf32> to vector<16x512xf32>
    %23 = arith.subf %11, %22 : vector<16x512xf32>
    %24 = math.exp %23 : vector<16x512xf32>
    %cst_11 = arith.constant dense<0.000000e+00> : vector<16xf32>
    %25 = vector.multi_reduction <add>, %24, %cst_11 [1] : vector<16x512xf32> to vector<16xf32>
    %26 = vector.shape_cast %25 : vector<16xf32> to vector<16x1xf32>
    %27 = arith.addf %21, %26 : vector<16x1xf32>
    %c0_12 = arith.constant 0 : index
    %c0_13 = arith.constant 0 : index
    %28 = vector.load %arg7[%c0_12, %c0_13] : memref<16x1xf32, #tpu.memory_space<vmem>>, vector<16x1xf32>
    tpu.vector_store %arg7[%c0_12, %c0_13], %27 {strides = array<i32>} : memref<16x1xf32, #tpu.memory_space<vmem>>, vector<16x1xf32>,
    %c0_14 = arith.constant 0 : index
    %c0_15 = arith.constant 0 : index
    %29 = vector.load %arg6[%c0_14, %c0_15] : memref<16x1xf32, #tpu.memory_space<vmem>>, vector<16x1xf32>
    tpu.vector_store %arg6[%c0_14, %c0_15], %17 {strides = array<i32>} : memref<16x1xf32, #tpu.memory_space<vmem>>, vector<16x1xf32>,
    %c0_i32_16 = arith.constant 0 : i32
    %30 = arith.cmpi eq, %arg1, %c0_i32_16 : i32
    %31 = arith.extui %30 : i1 to i32
    %c0_i32_17 = arith.constant 0 : i32
    %32 = arith.cmpi ne, %31, %c0_i32_17 : i32
    scf.if %32 {
      %c0_18 = arith.constant 0 : index
      %c0_19 = arith.constant 0 : index
      %33 = vector.load %arg6[%c0_18, %c0_19] : memref<16x1xf32, #tpu.memory_space<vmem>>, vector<16x1xf32>
      %c0_20 = arith.constant 0 : index
      %c0_21 = arith.constant 0 : index
      %34 = vector.load %arg7[%c0_20, %c0_21] : memref<16x1xf32, #tpu.memory_space<vmem>>, vector<16x1xf32>
      %35 = math.log %34 : vector<16x1xf32>
      %36 = arith.addf %33, %35 : vector<16x1xf32>
      %c0_22 = arith.constant 0 : index
      %c0_23 = arith.constant 0 : index
      %37 = vector.load %arg5[%c0_22, %c0_23] : memref<16x512xf32, #tpu.memory_space<vmem>>, vector<16x512xf32>
      %38 = vector.broadcast %36 : vector<16x1xf32> to vector<16x512xf32>
      %39 = arith.subf %37, %38 : vector<16x512xf32>
      %c0_24 = arith.constant 0 : index
      %c0_25 = arith.constant 0 : index
      %40 = vector.load %arg5[%c0_24, %c0_25] : memref<16x512xf32, #tpu.memory_space<vmem>>, vector<16x512xf32>
      tpu.vector_store %arg5[%c0_24, %c0_25], %39 {strides = array<i32>} : memref<16x512xf32, #tpu.memory_space<vmem>>, vector<16x512xf32>,
    } else {
    }
    return
  }
  func.func @transform_0(%arg0: i32, %arg1: i32) -> (i32, i32) {
    %c0_i32 = arith.constant 0 : i32
    %c0_i32_0 = arith.constant 0 : i32
    return %arg0, %c0_i32 : i32, i32
  }
  func.func @transform_1(%arg0: i32, %arg1: i32) -> (i32, i32) {
    %c0_i32 = arith.constant 0 : i32
    %c0_i32_0 = arith.constant 0 : i32
    return %arg1, %c0_i32 : i32, i32
  }
  func.func @transform_2(%arg0: i32, %arg1: i32) -> (i32, i32) {
    %c0_i32 = arith.constant 0 : i32
    %c0_i32_0 = arith.constant 0 : i32
    %c0_i32_1 = arith.constant 0 : i32
    return %c0_i32, %c0_i32_0 : i32, i32
  }
  func.func @transform_3(%arg0: i32, %arg1: i32) -> (i32, i32) {
    %c0_i32 = arith.constant 0 : i32
    %c0_i32_0 = arith.constant 0 : i32
    return %arg0, %c0_i32 : i32, i32
  }
}

</mosaic_0001>

<llo_original>
// kernel: tpu_custom_call.1
$region0: #{tpu_custom_call.1}
  #allocation0 [shape = 'u32[]', space=smem, size = 0x4, offset = 0x4, fixed_abs, tag = 'smem constant byte address 0x4 - core index']
  #allocation1 [shape = 'u32[144,128]{1,0:T(1,128)}', space=vmem, size = 0x12000, scoped, tag = 'internal scratch']
  #allocation2 [shape = 'f32[16,1]{1,0:T(8,128)}', space=vmem, size = 0x2000, scoped, tag = 'scratch operand']
  #allocation3 [shape = 'f32[16,1]{1,0:T(8,128)}', space=vmem, size = 0x2000, scoped, tag = 'scratch operand']
  %s0 = inlined_call_operand.hbm [shape: bf16[16,128], index: 0, kind: input, shape index: {}]
  %s1 = inlined_call_operand.hbm [shape: bf16[512,128], index: 1, kind: input, shape index: {}]
  %s2 = inlined_call_operand.vmem [shape: f32[1,512], index: 2, kind: input, shape index: {}]
  %s3 = inlined_call_operand.hbm [shape: f32[16,512], index: 3, kind: output, shape index: {}]
  %s4 = sld [smem:[#allocation0]]
  $region38: #{tpu_custom_call.1} parent=0
    _
  %s6 = ssub.s32 1, %s4
  %s7 = scalar_select 0, %s6, %s4
  $region1: #{tpu_custom_call.1} parent=0
    #allocation4 [shape = 'u8[4096]{0}', space=vmem, size = 0x1000, scoped, tag = 'input window, operand 0, single buffered']
    #allocation5 [shape = 's32[1]{0}', space=sflag, size = 0x4, scoped, tag = 'scoped memory for tpu_custom_call.1']
    #allocation6 [shape = 's32[1]{0}', space=sflag, size = 0x4, scoped, tag = 'scoped memory for tpu_custom_call.1']
    #allocation7 [shape = 'u8[131072]{0}', space=vmem, size = 0x20000, scoped, tag = 'input window, operand 1, single buffered']
    #allocation8 [shape = 's32[1]{0}', space=sflag, size = 0x4, scoped, tag = 'scoped memory for tpu_custom_call.1']
    #allocation9 [shape = 'u8[32768]{0}', space=vmem, size = 0x8000, scoped, tag = 'output window, operand 0, single buffered']
    %8 = vsyncpa [#allocation5], 0
    %9 = vsyncpa [#allocation8], 0
    %10 = vsyncpa [#allocation6], 0
    // Predicated region
    $region2: #{tpu_custom_call.1} parent=1 // pred_check
      _
    $region3: #{tpu_custom_call.1} parent=1 // pred_check_branch
      %12 = sbr.rel (0) target = $region5
    $region4: #{tpu_custom_call.1} parent=1 // pred_region
      %s14 = ssub.s32 128, 128
      %15 = vsyncadd [#allocation5], %s14
      %s16 = sshll.u32 [#allocation4], 4
      %s17 = int_to_ptr.vmem [resolvable:$true] %s16
      %22 = dma.hbm_to_vmem [thread:$0]  %s0, 128, %s17, [#allocation5], 64, 64, 4
    $region5: #{tpu_custom_call.1} parent=1 // pred_fallthru
      _
    // Predicated region
    $region6: #{tpu_custom_call.1} parent=1 // pred_check
      _
    $region7: #{tpu_custom_call.1} parent=1 // pred_check_branch
      %24 = sbr.rel (0) target = $region9
    $region8: #{tpu_custom_call.1} parent=1 // pred_region
      %s26 = ssub.s32 4096, 4096
      %27 = vsyncadd [#allocation8], %s26
      %s28 = sshll.u32 [#allocation7], 4
      %s29 = int_to_ptr.vmem [resolvable:$true] %s28
      %34 = dma.hbm_to_vmem [thread:$0]  %s1, 4096, %s29, [#allocation8], 64, 64, 4
    $region9: #{tpu_custom_call.1} parent=1 // pred_fallthru
      _
    // Predicated region
    $region10: #{tpu_custom_call.1} parent=1 // pred_check
      _
    $region11: #{tpu_custom_call.1} parent=1 // pred_check_branch
      %36 = sbr.rel (0) target = $region13
    $region12: #{tpu_custom_call.1} parent=1 // pred_region
      _
    $region13: #{tpu_custom_call.1} parent=1 // pred_fallthru
      _
    // Predicated region
    $region14: #{tpu_custom_call.1} parent=1 // pred_check
      _
    $region15: #{tpu_custom_call.1} parent=1 // pred_check_branch
      %38 = sbr.rel (0) target = $region17
    $region16: #{tpu_custom_call.1} parent=1 // pred_region
      %39 = dma.done [#allocation5], 128
    $region17: #{tpu_custom_call.1} parent=1 // pred_fallthru
      _
    // Predicated region
    $region18: #{tpu_custom_call.1} parent=1 // pred_check
      _
    $region19: #{tpu_custom_call.1} parent=1 // pred_check_branch
      %41 = sbr.rel (0) target = $region21
    $region20: #{tpu_custom_call.1} parent=1 // pred_region
      %42 = dma.done [#allocation8], 4096
    $region21: #{tpu_custom_call.1} parent=1 // pred_fallthru
      _
    %p44 = scmp.eq.s32.totalorder 0, 0
    // Predicated region
    $region22: #{tpu_custom_call.1} parent=1 // pred_check
      %p45 = pneg %p44
    $region23: #{tpu_custom_call.1} parent=1 // pred_check_branch
      %47 = sbr.rel (%p45) target = $region25
    $region24: #{tpu_custom_call.1} parent=1 // pred_region
      %vm48 = vcmask 7168
      %49 = vst.msk [vmem:[#allocation2] sm:$0xff] %vm48, -inf
      %50 = vst.msk [vmem:[#allocation2 + $0x8] sm:$0xff] %vm48, -inf
      %51 = vst.msk [vmem:[#allocation3] sm:$0xff] %vm48, 0.0
      %52 = vst.msk [vmem:[#allocation3 + $0x8] sm:$0xff] %vm48, 0.0
    $region25: #{tpu_custom_call.1} parent=1 // pred_fallthru
      _
    %s53 = smul.u32 0, 512
    %v54 = vld [vmem:[#allocation4] sm:$0xf]
    %v55 = vld [vmem:[#allocation4 + $0x4] sm:$0xf]
    %v56 = vld [vmem:[#allocation7] sm:$0xf]
    %v57 = vld [vmem:[#allocation7 + $0x4] sm:$0xf]
    %v58 = vld [vmem:[#allocation7 + $0x8] sm:$0xf]
    %v59 = vld [vmem:[#allocation7 + $0xc] sm:$0xf]
    %v60 = vld [vmem:[#allocation7 + $0x10] sm:$0xf]
    %v61 = vld [vmem:[#allocation7 + $0x14] sm:$0xf]
    %v62 = vld [vmem:[#allocation7 + $0x18] sm:$0xf]
    %v63 = vld [vmem:[#allocation7 + $0x1c] sm:$0xf]
    %v64 = vld [vmem:[#allocation7 + $0x20] sm:$0xf]
    %v65 = vld [vmem:[#allocation7 + $0x24] sm:$0xf]
    %v66 = vld [vmem:[#allocation7 + $0x28] sm:$0xf]
    %v67 = vld [vmem:[#allocation7 + $0x2c] sm:$0xf]
    %v68 = vld [vmem:[#allocation7 + $0x30] sm:$0xf]
    %v69 = vld [vmem:[#allocation7 + $0x34] sm:$0xf]
    %v70 = vld [vmem:[#allocation7 + $0x38] sm:$0xf]
    %v71 = vld [vmem:[#allocation7 + $0x3c] sm:$0xf]
    %v72 = vld [vmem:[#allocation7 + $0x40] sm:$0xf]
    %v73 = vld [vmem:[#allocation7 + $0x44] sm:$0xf]
    %v74 = vld [vmem:[#allocation7 + $0x48] sm:$0xf]
    %v75 = vld [vmem:[#allocation7 + $0x4c] sm:$0xf]
    %v76 = vld [vmem:[#allocation7 + $0x50] sm:$0xf]
    %v77 = vld [vmem:[#allocation7 + $0x54] sm:$0xf]
    %v78 = vld [vmem:[#allocation7 + $0x58] sm:$0xf]
    %v79 = vld [vmem:[#allocation7 + $0x5c] sm:$0xf]
    %v80 = vld [vmem:[#allocation7 + $0x60] sm:$0xf]
    %v81 = vld [vmem:[#allocation7 + $0x64] sm:$0xf]
    %v82 = vld [vmem:[#allocation7 + $0x68] sm:$0xf]
    %v83 = vld [vmem:[#allocation7 + $0x6c] sm:$0xf]
    %v84 = vld [vmem:[#allocation7 + $0x70] sm:$0xf]
    %v85 = vld [vmem:[#allocation7 + $0x74] sm:$0xf]
    %v86 = vld [vmem:[#allocation7 + $0x78] sm:$0xf]
    %v87 = vld [vmem:[#allocation7 + $0x7c] sm:$0xf]
    %v88 = vld [vmem:[#allocation7 + $0x80] sm:$0xf]
    %v89 = vld [vmem:[#allocation7 + $0x84] sm:$0xf]
    %v90 = vld [vmem:[#allocation7 + $0x88] sm:$0xf]
    %v91 = vld [vmem:[#allocation7 + $0x8c] sm:$0xf]
    %v92 = vld [vmem:[#allocation7 + $0x90] sm:$0xf]
    %v93 = vld [vmem:[#allocation7 + $0x94] sm:$0xf]
    %v94 = vld [vmem:[#allocation7 + $0x98] sm:$0xf]
    %v95 = vld [vmem:[#allocation7 + $0x9c] sm:$0xf]
    %v96 = vld [vmem:[#allocation7 + $0xa0] sm:$0xf]
    %v97 = vld [vmem:[#allocation7 + $0xa4] sm:$0xf]
    %v98 = vld [vmem:[#allocation7 + $0xa8] sm:$0xf]
    %v99 = vld [vmem:[#allocation7 + $0xac] sm:$0xf]
    %v100 = vld [vmem:[#allocation7 + $0xb0] sm:$0xf]
    %v101 = vld [vmem:[#allocation7 + $0xb4] sm:$0xf]
    %v102 = vld [vmem:[#allocation7 + $0xb8] sm:$0xf]
    %v103 = vld [vmem:[#allocation7 + $0xbc] sm:$0xf]
    %v104 = vld [vmem:[#allocation7 + $0xc0] sm:$0xf]
    %v105 = vld [vmem:[#allocation7 + $0xc4] sm:$0xf]
    %v106 = vld [vmem:[#allocation7 + $0xc8] sm:$0xf]
    %v107 = vld [vmem:[#allocation7 + $0xcc] sm:$0xf]
    %v108 = vld [vmem:[#allocation7 + $0xd0] sm:$0xf]
    %v109 = vld [vmem:[#allocation7 + $0xd4] sm:$0xf]
    %v110 = vld [vmem:[#allocation7 + $0xd8] sm:$0xf]
    %v111 = vld [vmem:[#allocation7 + $0xdc] sm:$0xf]
    %v112 = vld [vmem:[#allocation7 + $0xe0] sm:$0xf]
    %v113 = vld [vmem:[#allocation7 + $0xe4] sm:$0xf]
    %v114 = vld [vmem:[#allocation7 + $0xe8] sm:$0xf]
    %v115 = vld [vmem:[#allocation7 + $0xec] sm:$0xf]
    %v116 = vld [vmem:[#allocation7 + $0xf0] sm:$0xf]
    %v117 = vld [vmem:[#allocation7 + $0xf4] sm:$0xf]
    %v118 = vld [vmem:[#allocation7 + $0xf8] sm:$0xf]
    %v119 = vld [vmem:[#allocation7 + $0xfc] sm:$0xf]
    %s120 = sshra.s32 %s53, 7
    %s121 = sand.u32 %s53, 127
    %s122 = scalar_lea.vmem %s2, %s120
    %v123 = vld [vmem:[%s122] sm:$0xf]
    %v125 = vlaneseq
    %v126 = vshrl.u32 %v125, 7
    %v127 = vsub.s32 0, %v126
    %v128 = vrot.slane %v123, %v127
    %v129 = vlaneseq
    %v130 = vshrl.u32 %v129, 7
    %v131 = vsub.s32 1, %v130
    %v132 = vrot.slane %v123, %v131
    %v133 = vlaneseq
    %v134 = vshrl.u32 %v133, 7
    %v135 = vsub.s32 2, %v134
    %v136 = vrot.slane %v123, %v135
    %v137 = vlaneseq
    %v138 = vshrl.u32 %v137, 7
    %v139 = vsub.s32 3, %v138
    %v140 = vrot.slane %v123, %v139
    %v147 = vunpack.c.l.b16 %v54
    %v148 = vunpack.c.l.b16 %v55
    %v149 = vpack.c.b16 %v148, %v147
    %v215 = vunpack.c.l.b16 %v56
    %v216 = vunpack.c.l.b16 %v57
    %v217 = vunpack.c.l.b16 %v58
    %v218 = vunpack.c.l.b16 %v59
    %v219 = vunpack.c.l.b16 %v60
    %v220 = vunpack.c.l.b16 %v61
    %v221 = vunpack.c.l.b16 %v62
    %v222 = vunpack.c.l.b16 %v63
    %v223 = vunpack.c.l.b16 %v64
    %v224 = vunpack.c.l.b16 %v65
    %v225 = vunpack.c.l.b16 %v66
    %v226 = vunpack.c.l.b16 %v67
    %v227 = vunpack.c.l.b16 %v68
    %v228 = vunpack.c.l.b16 %v69
    %v229 = vunpack.c.l.b16 %v70
    %v230 = vunpack.c.l.b16 %v71
    %v231 = vunpack.c.l.b16 %v72
    %v232 = vunpack.c.l.b16 %v73
    %v233 = vunpack.c.l.b16 %v74
    %v234 = vunpack.c.l.b16 %v75
    %v235 = vunpack.c.l.b16 %v76
    %v236 = vunpack.c.l.b16 %v77
    %v237 = vunpack.c.l.b16 %v78
    %v238 = vunpack.c.l.b16 %v79
    %v239 = vunpack.c.l.b16 %v80
    %v240 = vunpack.c.l.b16 %v81
    %v241 = vunpack.c.l.b16 %v82
    %v242 = vunpack.c.l.b16 %v83
    %v243 = vunpack.c.l.b16 %v84
    %v244 = vunpack.c.l.b16 %v85
    %v245 = vunpack.c.l.b16 %v86
    %v246 = vunpack.c.l.b16 %v87
    %v247 = vunpack.c.l.b16 %v88
    %v248 = vunpack.c.l.b16 %v89
    %v249 = vunpack.c.l.b16 %v90
    %v250 = vunpack.c.l.b16 %v91
    %v251 = vunpack.c.l.b16 %v92
    %v252 = vunpack.c.l.b16 %v93
    %v253 = vunpack.c.l.b16 %v94
    %v254 = vunpack.c.l.b16 %v95
    %v255 = vunpack.c.l.b16 %v96
    %v256 = vunpack.c.l.b16 %v97
    %v257 = vunpack.c.l.b16 %v98
    %v258 = vunpack.c.l.b16 %v99
    %v259 = vunpack.c.l.b16 %v100
    %v260 = vunpack.c.l.b16 %v101
    %v261 = vunpack.c.l.b16 %v102
    %v262 = vunpack.c.l.b16 %v103
    %v263 = vunpack.c.l.b16 %v104
    %v264 = vunpack.c.l.b16 %v105
    %v265 = vunpack.c.l.b16 %v106
    %v266 = vunpack.c.l.b16 %v107
    %v267 = vunpack.c.l.b16 %v108
    %v268 = vunpack.c.l.b16 %v109
    %v269 = vunpack.c.l.b16 %v110
    %v270 = vunpack.c.l.b16 %v111
    %v271 = vunpack.c.l.b16 %v112
    %v272 = vunpack.c.l.b16 %v113
    %v273 = vunpack.c.l.b16 %v114
    %v274 = vunpack.c.l.b16 %v115
    %v275 = vunpack.c.l.b16 %v116
    %v276 = vunpack.c.l.b16 %v117
    %v277 = vunpack.c.l.b16 %v118
    %v278 = vunpack.c.l.b16 %v119
    %v279 = vpack.c.b16 %v216, %v215
    %v280 = vpack.c.b16 %v218, %v217
    %v281 = vpack.c.b16 %v220, %v219
    %v282 = vpack.c.b16 %v222, %v221
    %v283 = vpack.c.b16 %v224, %v223
    %v284 = vpack.c.b16 %v226, %v225
    %v285 = vpack.c.b16 %v228, %v227
    %v286 = vpack.c.b16 %v230, %v229
    %v287 = vpack.c.b16 %v232, %v231
    %v288 = vpack.c.b16 %v234, %v233
    %v289 = vpack.c.b16 %v236, %v235
    %v290 = vpack.c.b16 %v238, %v237
    %v291 = vpack.c.b16 %v240, %v239
    %v292 = vpack.c.b16 %v242, %v241
    %v293 = vpack.c.b16 %v244, %v243
    %v294 = vpack.c.b16 %v246, %v245
    %v295 = vpack.c.b16 %v248, %v247
    %v296 = vpack.c.b16 %v250, %v249
    %v297 = vpack.c.b16 %v252, %v251
    %v298 = vpack.c.b16 %v254, %v253
    %v299 = vpack.c.b16 %v256, %v255
    %v300 = vpack.c.b16 %v258, %v257
    %v301 = vpack.c.b16 %v260, %v259
    %v302 = vpack.c.b16 %v262, %v261
    %v303 = vpack.c.b16 %v264, %v263
    %v304 = vpack.c.b16 %v266, %v265
    %v305 = vpack.c.b16 %v268, %v267
    %v306 = vpack.c.b16 %v270, %v269
    %v307 = vpack.c.b16 %v272, %v271
    %v308 = vpack.c.b16 %v274, %v273
    %v309 = vpack.c.b16 %v276, %v275
    %v310 = vpack.c.b16 %v278, %v277
    %343 = vmatprep.subr.bf16.mxu0 0
    %344 = vmatpush1.bf16.xpose.msra.mxu0 %v279
    %345 = vmatprep.subr.bf16.mxu0 0
    %346 = vmatpush1.bf16.xpose.msra.mxu0 %v280
    %347 = vmatprep.subr.bf16.mxu0 0
    %348 = vmatpush1.bf16.xpose.msra.mxu0 %v281
    %349 = vmatprep.subr.bf16.mxu0 0
    %350 = vmatpush1.bf16.xpose.msra.mxu0 %v282
    %351 = vmatprep.subr.bf16.mxu0 0
    %352 = vmatpush1.bf16.xpose.msra.mxu0 %v283
    %353 = vmatprep.subr.bf16.mxu0 0
    %354 = vmatpush1.bf16.xpose.msra.mxu0 %v284
    %355 = vmatprep.subr.bf16.mxu0 0
    %356 = vmatpush1.bf16.xpose.msra.mxu0 %v285
    %357 = vmatprep.subr.bf16.mxu0 0
    %358 = vmatpush1.bf16.xpose.msra.mxu0 %v286
    %359 = vmatprep.subr.bf16.mxu0 0
    %360 = vmatpush1.bf16.xpose.msra.mxu0 %v287
    %361 = vmatprep.subr.bf16.mxu0 0
    %362 = vmatpush1.bf16.xpose.msra.mxu0 %v288
    %363 = vmatprep.subr.bf16.mxu0 0
    %364 = vmatpush1.bf16.xpose.msra.mxu0 %v289
    %365 = vmatprep.subr.bf16.mxu0 0
    %366 = vmatpush1.bf16.xpose.msra.mxu0 %v290
    %367 = vmatprep.subr.bf16.mxu0 0
    %368 = vmatpush1.bf16.xpose.msra.mxu0 %v291
    %369 = vmatprep.subr.bf16.mxu0 0
    %370 = vmatpush1.bf16.xpose.msra.mxu0 %v292
    %371 = vmatprep.subr.bf16.mxu0 0
    %372 = vmatpush1.bf16.xpose.msra.mxu0 %v293
    %373 = vmatprep.subr.bf16.mxu0 0
    %374 = vmatpush1.bf16.xpose.msra.mxu0 %v294
    %375 = vmatprep.mubr.bf16.mxu0 0
    %376 = vmatmul.mubr.bf16.gmra.mrb[0].mxu0 %v149
    %v377 = vpop.f32.mrb[0].mxu0
    %v378 = vadd.f32 %v128, %v377
    %v379 = vpop.f32.mrb[0].mxu0
    %v380 = vadd.f32 %v132, %v379
    %v381 = vpop.f32.mrb[0].mxu0
    %v382 = vadd.f32 %v128, %v381
    %v383 = vpop.f32.mrb[0].mxu0
    %v384 = vadd.f32 %v132, %v383
    %385 = vdwg.mxu0
    %386 = vmatprep.subr.bf16.mxu0 0
    %387 = vmatpush1.bf16.xpose.msra.mxu0 %v295
    %388 = vmatprep.subr.bf16.mxu0 0
    %389 = vmatpush1.bf16.xpose.msra.mxu0 %v296
    %390 = vmatprep.subr.bf16.mxu0 0
    %391 = vmatpush1.bf16.xpose.msra.mxu0 %v297
    %392 = vmatprep.subr.bf16.mxu0 0
    %393 = vmatpush1.bf16.xpose.msra.mxu0 %v298
    %394 = vmatprep.subr.bf16.mxu0 0
    %395 = vmatpush1.bf16.xpose.msra.mxu0 %v299
    %396 = vmatprep.subr.bf16.mxu0 0
    %397 = vmatpush1.bf16.xpose.msra.mxu0 %v300
    %398 = vmatprep.subr.bf16.mxu0 0
    %399 = vmatpush1.bf16.xpose.msra.mxu0 %v301
    %400 = vmatprep.subr.bf16.mxu0 0
    %401 = vmatpush1.bf16.xpose.msra.mxu0 %v302
    %402 = vmatprep.subr.bf16.mxu0 0
    %403 = vmatpush1.bf16.xpose.msra.mxu0 %v303
    %404 = vmatprep.subr.bf16.mxu0 0
    %405 = vmatpush1.bf16.xpose.msra.mxu0 %v304
    %406 = vmatprep.subr.bf16.mxu0 0
    %407 = vmatpush1.bf16.xpose.msra.mxu0 %v305
    %408 = vmatprep.subr.bf16.mxu0 0
    %409 = vmatpush1.bf16.xpose.msra.mxu0 %v306
    %410 = vmatprep.subr.bf16.mxu0 0
    %411 = vmatpush1.bf16.xpose.msra.mxu0 %v307
    %412 = vmatprep.subr.bf16.mxu0 0
    %413 = vmatpush1.bf16.xpose.msra.mxu0 %v308
    %414 = vmatprep.subr.bf16.mxu0 0
    %415 = vmatpush1.bf16.xpose.msra.mxu0 %v309
    %416 = vmatprep.subr.bf16.mxu0 0
    %417 = vmatpush1.bf16.xpose.msra.mxu0 %v310
    %418 = vmatprep.mubr.bf16.mxu0 0
    %419 = vmatmul.mubr.bf16.gmra.mrb[0].mxu0 %v149
    %v420 = vpop.f32.mrb[0].mxu0
    %v421 = vadd.f32 %v136, %v420
    %v422 = vpop.f32.mrb[0].mxu0
    %v423 = vadd.f32 %v140, %v422
    %v424 = vpop.f32.mrb[0].mxu0
    %v425 = vadd.f32 %v136, %v424
    %v426 = vpop.f32.mrb[0].mxu0
    %v427 = vadd.f32 %v140, %v426
    %428 = vdwg.mxu0
    %s429 = smul.addr %s120, 8
    %s430 = scalar_lea.vmem [#allocation9], %s429
    %431 = vst [vmem:[%s430] sm:$0xff] %v378
    %432 = vst [vmem:[%s430 + $0x8] sm:$0xff] %v380
    %433 = vst [vmem:[%s430 + $0x10] sm:$0xff] %v421
    %434 = vst [vmem:[%s430 + $0x18] sm:$0xff] %v423
    %435 = vst [vmem:[%s430 + $0x20] sm:$0xff] %v382
    %436 = vst [vmem:[%s430 + $0x28] sm:$0xff] %v384
    %437 = vst [vmem:[%s430 + $0x30] sm:$0xff] %v425
    %438 = vst [vmem:[%s430 + $0x38] sm:$0xff] %v427
    %v439 = vld [vmem:[#allocation2] sm:$0xff]
    %v440 = vld [vmem:[#allocation2 + $0x8] sm:$0xff]
    %v441 = vmax.f32 %v378, %v421
    %v442 = vmax.f32 %v380, %v423
    %v443 = vmax.f32 %v441, %v442
    %444 = vmax.xlane.f32.xlu0 %v443
    %v445 = vpop.xlane.xlu0 %444
    %v446 = vmax.f32 %v382, %v425
    %v447 = vmax.f32 %v384, %v427
    %v448 = vmax.f32 %v446, %v447
    %449 = vmax.xlane.f32.xlu0 %v448
    %v450 = vpop.xlane.xlu0 %449
    %v451 = vmax.f32 %v439, %v445
    %v452 = vmax.f32 %v440, %v450
    %v453 = vld [vmem:[#allocation3] sm:$0xff]
    %v454 = vld [vmem:[#allocation3 + $0x8] sm:$0xff]
    %v455 = vsub.f32 %v439, %v451
    %v456 = vsub.f32 %v440, %v452
    %v457 = vmul.f32 %v455, 1.442695
    %v458 = vpow.pop %v457
    %v459 = vmul.f32 %v456, 1.442695
    %v460 = vpow.pop %v459
    %v461 = vmul.f32 %v453, %v458
    %v462 = vmul.f32 %v454, %v460
    %464 = vset.pattern.permute.xlu0 0
    %465 = vperm.xlu0 %464, %v451
    %v466 = vpop.permute.xlu0 %465
    %469 = vset.pattern.permute.xlu0 0
    %470 = vperm.xlu0 %469, %v452
    %v471 = vpop.permute.xlu0 %470
    %v473 = vsub.f32 %v378, %v466
    %v474 = vsub.f32 %v380, %v466
    %v475 = vsub.f32 %v421, %v466
    %v476 = vsub.f32 %v423, %v466
    %v477 = vsub.f32 %v382, %v471
    %v478 = vsub.f32 %v384, %v471
    %v479 = vsub.f32 %v425, %v471
    %v480 = vsub.f32 %v427, %v471
    %v481 = vmul.f32 %v473, 1.442695
    %v482 = vpow.pop %v481
    %v483 = vmul.f32 %v474, 1.442695
    %v484 = vpow.pop %v483
    %v485 = vmul.f32 %v475, 1.442695
    %v486 = vpow.pop %v485
    %v487 = vmul.f32 %v476, 1.442695
    %v488 = vpow.pop %v487
    %v489 = vmul.f32 %v477, 1.442695
    %v490 = vpow.pop %v489
    %v491 = vmul.f32 %v478, 1.442695
    %v492 = vpow.pop %v491
    %v493 = vmul.f32 %v479, 1.442695
    %v494 = vpow.pop %v493
    %v495 = vmul.f32 %v480, 1.442695
    %v496 = vpow.pop %v495
    %v497 = vadd.f32 %v482, %v484
    %v498 = vadd.f32 %v497, %v486
    %v499 = vadd.f32 %v498, %v488
    %500 = vadd.xlane.f32.xlu0 %v499
    %v501 = vpop.xlane.xlu0 %500
    %v502 = vadd.f32 %v490, %v492
    %v503 = vadd.f32 %v502, %v494
    %v504 = vadd.f32 %v503, %v496
    %505 = vadd.xlane.f32.xlu0 %v504
    %v506 = vpop.xlane.xlu0 %505
    %v507 = vadd.f32 %v461, %v501
    %v508 = vadd.f32 %v462, %v506
    %vm509 = vcmask 7168
    %510 = vst.msk [vmem:[#allocation3] sm:$0xff] %vm509, %v507
    %511 = vst.msk [vmem:[#allocation3 + $0x8] sm:$0xff] %vm509, %v508
    %512 = vst.msk [vmem:[#allocation2] sm:$0xff] %vm509, %v451
    %513 = vst.msk [vmem:[#allocation2 + $0x8] sm:$0xff] %vm509, %v452
    // Predicated region
    $region26: #{tpu_custom_call.1} parent=1 // pred_check
      %p514 = pneg %p44
    $region27: #{tpu_custom_call.1} parent=1 // pred_check_branch
      %516 = sbr.rel (%p514) target = $region29
    $region28: #{tpu_custom_call.1} parent=1 // pred_region
      %v517 = vld [vmem:[#allocation2] sm:$0xff]
      %v518 = vld [vmem:[#allocation2 + $0x8] sm:$0xff]
      %v519 = vld [vmem:[#allocation3] sm:$0xff]
      %v520 = vld [vmem:[#allocation3 + $0x8] sm:$0xff]
      %v521 = vlog2.pop %v519
      %v522 = vmul.f32 %v521, 0.6931472
      %v523 = vlog2.pop %v520
      %v524 = vmul.f32 %v523, 0.6931472
      %v525 = vadd.f32 %v517, %v522
      %v526 = vadd.f32 %v518, %v524
      %v527 = vld [vmem:[#allocation9] sm:$0xff]
      %v528 = vld [vmem:[#allocation9 + $0x8] sm:$0xff]
      %v529 = vld [vmem:[#allocation9 + $0x10] sm:$0xff]
      %v530 = vld [vmem:[#allocation9 + $0x18] sm:$0xff]
      %v531 = vld [vmem:[#allocation9 + $0x20] sm:$0xff]
      %v532 = vld [vmem:[#allocation9 + $0x28] sm:$0xff]
      %v533 = vld [vmem:[#allocation9 + $0x30] sm:$0xff]
      %v534 = vld [vmem:[#allocation9 + $0x38] sm:$0xff]
      %536 = vset.pattern.permute.xlu0 0
      %537 = vperm.xlu0 %536, %v525
      %v538 = vpop.permute.xlu0 %537
      %541 = vset.pattern.permute.xlu0 0
      %542 = vperm.xlu0 %541, %v526
      %v543 = vpop.permute.xlu0 %542
      %v545 = vsub.f32 %v527, %v538
      %v546 = vsub.f32 %v528, %v538
      %v547 = vsub.f32 %v529, %v538
      %v548 = vsub.f32 %v530, %v538
      %v549 = vsub.f32 %v531, %v543
      %v550 = vsub.f32 %v532, %v543
      %v551 = vsub.f32 %v533, %v543
      %v552 = vsub.f32 %v534, %v543
      %553 = vst [vmem:[#allocation9] sm:$0xff] %v545
      %554 = vst [vmem:[#allocation9 + $0x8] sm:$0xff] %v546
      %555 = vst [vmem:[#allocation9 + $0x10] sm:$0xff] %v547
      %556 = vst [vmem:[#allocation9 + $0x18] sm:$0xff] %v548
      %557 = vst [vmem:[#allocation9 + $0x20] sm:$0xff] %v549
      %558 = vst [vmem:[#allocation9 + $0x28] sm:$0xff] %v550
      %559 = vst [vmem:[#allocation9 + $0x30] sm:$0xff] %v551
      %560 = vst [vmem:[#allocation9 + $0x38] sm:$0xff] %v552
    $region29: #{tpu_custom_call.1} parent=1 // pred_fallthru
      _
    // Predicated region
    $region30: #{tpu_custom_call.1} parent=1 // pred_check
      _
    $region31: #{tpu_custom_call.1} parent=1 // pred_check_branch
      %562 = sbr.rel (0) target = $region33
    $region32: #{tpu_custom_call.1} parent=1 // pred_region
      %s564 = ssub.s32 1024, 1024
      %565 = vsyncadd [#allocation6], %s564
      %s566 = sshll.u32 [#allocation9], 4
      %s567 = int_to_ptr.vmem [resolvable:$true] %s566
      %572 = dma.vmem_to_hbm [thread:$0]  %s567, 1024, %s3, [#allocation6], 512, 512, 32
    $region33: #{tpu_custom_call.1} parent=1 // pred_fallthru
      _
    // Predicated region
    $region34: #{tpu_custom_call.1} parent=1 // pred_check
      _
    $region35: #{tpu_custom_call.1} parent=1 // pred_check_branch
      %574 = sbr.rel (0) target = $region37
    $region36: #{tpu_custom_call.1} parent=1 // pred_region
      %575 = dma.done [#allocation6], 1024
    $region37: #{tpu_custom_call.1} parent=1 // pred_fallthru
      _
    %576 = vsyncpa [#allocation5], 1
    %577 = vsyncpa [#allocation8], 1
    %578 = vsyncpa [#allocation6], 1

</llo_original>
